<compile_context>
chip_gen: v7x
topology: tpu7x:2x2x1
jax: 0.10.0
libtpu: 0.0.40
codegen_flags: <defaults>
</compile_context>

<pallas_src>
import functools

import jax
import jax.numpy as jnp
from jax.experimental import pallas as pl
from jax.experimental.pallas import tpu as pltpu

LN_EPS = 1e-5        # torch.nn.LayerNorm default eps
NORM_EPS = 1e-12     # F.normalize default eps
POOL_EPS = 1e-9      # mask.sum(1).clamp(min=1e-9)


def pool_sum_kernel(h_ref, mask_ref, out_ref):
    """Streamed masked sum over the sequence axis (output block = accumulator)."""
    s = pl.program_id(1)

    @pl.when(s == 0)
    def _():
        out_ref[...] = jnp.zeros_like(out_ref)

    h = h_ref[...]                              # (TB, TS, H)  bf16, straight from HBM
    m = mask_ref[...]                           # (TB, TS)     f32 in {0, 1}

    # Batched MXU matvec: (TB, 1, TS) @ (TB, TS, H) -> (TB, 1, H), f32 accumulate.
    # Mask values are exactly 0/1 so the bf16 product is exact; the MXU is idle
    # here otherwise, and this frees VALU/XLU slots (v5e has no bf16 VALU).
    partial = jax.lax.dot_general(
        m.astype(h.dtype)[:, None, :], h,
        dimension_numbers=(((2,), (1,)), ((0,), (0,))),
        preferred_element_type=jnp.float32)
    out_ref[...] += partial[:, 0, :]


def proj_ln_kernel(sum_ref, cnt_ref, w_ref, b_ref, g_ref, beta_ref, emb_ref):
    """pooled = masked_sum / count; Linear(H->P) (bf16 MXU, f32 acc) + LayerNorm(P)."""
    pooled = sum_ref[...] / cnt_ref[...]                               # (B, H) f32
    proj = jnp.dot(pooled.astype(w_ref.dtype), w_ref[...],
                   preferred_element_type=jnp.float32)
    proj = proj + b_ref[...]                                           # (B, P) f32
    mu = jnp.mean(proj, axis=-1, keepdims=True)
    var = jnp.mean((proj - mu) ** 2, axis=-1, keepdims=True)
    xhat = (proj - mu) * jax.lax.rsqrt(var + LN_EPS)
    emb_ref[...] = xhat * g_ref[...] + beta_ref[...]


def infonce_kernel(emb_ref, loss_ref, acc_ref, div_ref, *, bs, inv_t):
    """InfoNCE loss + contrastive accuracy + embedding diversity.

    Exact rsqrt normalization (no approx-reciprocal error in the logits),
    single bf16 MXU call a @ [a; b].T with f32 accumulation: columns [:bs] are
    sim (a@a.T) for diversity, columns [bs:] are the logits (a@b.T) * 1/t.
    """
    emb = emb_ref[...]                                                 # (2*bs, P) f32

    # F.normalize(x, 2, 1): x / max(||x||, eps)  ==  x * rsqrt(max(||x||^2, eps^2))
    sq = jnp.sum(emb * emb, axis=1, keepdims=True)
    inv_n = jax.lax.rsqrt(jnp.maximum(sq, NORM_EPS * NORM_EPS))
    n_bf = (emb * inv_n).astype(jnp.bfloat16)
    a = n_bf[:bs, :]

    prods = jax.lax.dot_general(
        a, n_bf, (((1,), (1,)), ((), ())),
        preferred_element_type=jnp.float32)                            # (bs, 2*bs)
    sim = prods[:, :bs]                                                # a @ a.T
    logits = prods[:, bs:] * inv_t                                     # a @ b.T / t

    row = jax.lax.broadcasted_iota(jnp.int32, (bs, bs), 0)
    col = jax.lax.broadcasted_iota(jnp.int32, (bs, bs), 1)
    eye = row == col

    # cross_entropy with labels = arange(bs): mean_i [logsumexp(logits_i) - logits_ii]
    diag = jnp.sum(jnp.where(eye, logits, 0.0), axis=1, keepdims=True)      # (bs, 1)
    row_max = jnp.max(logits, axis=1, keepdims=True)                        # (bs, 1)
    lse = row_max + jnp.log(
        jnp.sum(jnp.exp(logits - row_max), axis=1, keepdims=True))          # (bs, 1)
    loss_ref[...] = jnp.sum(lse - diag, axis=0, keepdims=True) * (1.0 / bs)

    # accuracy: argmax(logits, 1) == arange(bs)  (first maximal column on ties)
    is_max = logits >= row_max
    argmax = jnp.min(jnp.where(is_max, col, bs), axis=1, keepdims=True)     # (bs, 1)
    labels = jax.lax.broadcasted_iota(jnp.int32, (bs, 1), 0)
    correct = (argmax == labels).astype(jnp.float32)
    acc_ref[...] = jnp.sum(correct, axis=0, keepdims=True) * (1.0 / bs)

    # diversity: 1 - mean of off-diagonal elements of a @ a.T
    off_row = jnp.sum(jnp.where(eye, 0.0, sim), axis=1, keepdims=True)      # (bs, 1)
    off_sum = jnp.sum(off_row, axis=0, keepdims=True)                       # (1, 1)
    div_ref[...] = 1.0 - off_sum * (1.0 / float(bs * bs - bs))


def _pick_tiles(B, S_pad, H, itemsize, budget_bytes):
    """Budget-aware (TB, TS) selection for the streamed pooling kernel.

    TB: multiple of 8 (sublane constraint) dividing B, capped at 256, capped so
        a minimal 128-wide seq tile fits the per-buffer budget, and <= B//2 so
        the "parallel" batch axis keeps >= 2 grid steps (v7x has 2 TensorCores).
    TS: largest multiple of 128 dividing S_pad with TB*TS*H*itemsize <= budget
        (Pallas double-buffers the hidden tile).
    """
    max_tb = max(8, budget_bytes // (128 * H * itemsize))
    tb = B
    upper = min(256, B // 2, max_tb)
    for cand in range(8, upper + 1, 8):
        if B % cand == 0:
            tb = cand
    ts = 128
    cand = 128
    while cand <= S_pad:
        if S_pad % cand == 0 and tb * cand * H * itemsize <= budget_bytes:
            ts = cand
        cand += 128
    return tb, ts


def contrastive_forward(hidden_states, attention_mask, proj_w, proj_b,
                        ln_gamma, ln_beta, *, temperature=0.05,
                        batch_tile=None, seq_tile=None):
    """Pallas port of ContrastiveModel.forward (backbone last hidden state given).

    proj_w must be pre-transposed to (hidden, proj_dim).
    """
    B, S, H = hidden_states.shape
    Hw, P = proj_w.shape
    assert Hw == H, "proj_w must be pre-transposed to (hidden_size, proj_dim)"
    assert B % 2 == 0 and B >= 4, "need an even batch with bs >= 2"
    bs = B // 2
    itemsize = jnp.dtype(hidden_states.dtype).itemsize

    # Generation-aware VMEM budgeting: ~16 MiB per hidden buffer on v5e/v6e
    # (128 MiB VMEM), ~8 MiB on v7x (64 MiB per TensorCore).
    try:
        vmem_cap = int(pltpu.get_tpu_info().vmem_capacity_bytes)
    except Exception:
        vmem_cap = 64 * 1024 * 1024        # conservative fallback (v7x per-TC)
    budget = max(4 << 20, min(16 << 20, vmem_cap // 8))

    mask_f32 = attention_mask.astype(jnp.float32)
    # mask count is a trivial (B,) reduction -> do it once in XLA, not per seq step.
    counts = jnp.maximum(jnp.sum(mask_f32, axis=1, keepdims=True), POOL_EPS)   # (B, 1)

    # Pad the sequence to a multiple of 128 (mask is zero there -> pooled sum
    # unchanged) so we never fall back to loading the whole sequence per tile.
    S_pad = ((S + 127) // 128) * 128
    if S_pad != S:
        hidden_states = jnp.pad(hidden_states, ((0, 0), (0, S_pad - S), (0, 0)))
        mask_f32 = jnp.pad(mask_f32, ((0, 0), (0, S_pad - S)))

    auto_tb, auto_ts = _pick_tiles(B, S_pad, H, itemsize, budget)
    TB = batch_tile if batch_tile is not None else auto_tb
    TS = seq_tile if seq_tile is not None else auto_ts
    assert B % TB == 0 and (TB % 8 == 0 or TB == B)
    assert S_pad % TS == 0 and TS % 128 == 0

    # Explicit scoped-VMEM limit: double-buffered hidden + mask tiles, resident
    # (double-buffered across batch steps) f32 output block, plus margin.
    k1_need = 2 * (TB * TS * H * itemsize) + 2 * (TB * TS * 4) + 2 * (TB * H * 4)
    k1_limit = int(min(max(1.5 * k1_need + (2 << 20), 16 << 20), 0.9 * vmem_cap))

    pooled_sum = pl.pallas_call(
        pool_sum_kernel,
        out_shape=jax.ShapeDtypeStruct((B, H), jnp.float32),
        grid=(B // TB, S_pad // TS),
        in_specs=[
            pl.BlockSpec((TB, TS, H), lambda b, s: (b, s, 0)),   # hidden (bf16)
            pl.BlockSpec((TB, TS), lambda b, s: (b, s)),         # mask (f32)
        ],
        out_specs=pl.BlockSpec((TB, H), lambda b, s: (b, 0)),    # f32 accumulator
        compiler_params=pltpu.CompilerParams(
            dimension_semantics=("parallel", "arbitrary"),
            vmem_limit_bytes=k1_limit),
    )(hidden_states, mask_f32)

    vmem = pltpu.MemorySpace.VMEM

    # Projection head in its own tiny call: the bf16 (H, P) weight is resident
    # in VMEM exactly once instead of double-buffered across the seq stream.
    # TODO(synk): tile this call over batch blocks for contrastive batches in
    # the thousands (pooled/emb would then exceed one VMEM block).
    k2_need = H * P * 2 + B * H * 4 + 2 * B * P * 4 + (B + 32) * 128 * 4
    k2_limit = int(min(max(2 * k2_need, 32 << 20), 0.9 * vmem_cap))
    emb = pl.pallas_call(
        proj_ln_kernel,
        out_shape=jax.ShapeDtypeStruct((B, P), jnp.float32),
        in_specs=[pl.BlockSpec(memory_space=vmem)] * 6,
        out_specs=pl.BlockSpec(memory_space=vmem),
        compiler_params=pltpu.CompilerParams(vmem_limit_bytes=k2_limit),
    )(pooled_sum,
      counts,
      proj_w.astype(jnp.bfloat16),
      proj_b.reshape(1, P).astype(jnp.float32),
      ln_gamma.reshape(1, P).astype(jnp.float32),
      ln_beta.reshape(1, P).astype(jnp.float32))

    # TODO(synk): for bs in the thousands, stream the (bs, 2*bs) logits with a
    # column-blocked online-LSE grid (flash-style) instead of one VMEM block.
    k3_need = 2 * bs * P * 4 + bs * 2 * bs * 4 + 2 * bs * P * 2 + 32 * 2 * bs * 4
    k3_limit = int(min(max(2 * k3_need, 32 << 20), 0.9 * vmem_cap))
    loss, acc, div = pl.pallas_call(
        functools.partial(infonce_kernel, bs=bs, inv_t=float(1.0 / temperature)),
        out_shape=(jax.ShapeDtypeStruct((1, 1), jnp.float32),
                   jax.ShapeDtypeStruct((1, 1), jnp.float32),
                   jax.ShapeDtypeStruct((1, 1), jnp.float32)),
        in_specs=[pl.BlockSpec(memory_space=vmem)],
        out_specs=(pl.BlockSpec(memory_space=vmem),
                   pl.BlockSpec(memory_space=vmem),
                   pl.BlockSpec(memory_space=vmem)),
        compiler_params=pltpu.CompilerParams(vmem_limit_bytes=k3_limit),
    )(emb)

    loss = loss[0, 0]
    metrics = {'loss': loss,
               'contrastive_accuracy': acc[0, 0],
               'embedding_diversity': div[0, 0]}
    return {'loss': loss, 'embeddings': emb, 'metrics': metrics}


if __name__ == "__main__":
    # Small synthetic shapes (real model: hidden=3840/4608). B must be even.
    # S=250 is deliberately not a multiple of 128 to exercise the padding path;
    # batch_tile=8 / seq_tile=128 give a (2, 2) grid so both the parallel batch
    # axis and the sequence-accumulation path are exercised.
    B, S, H, P = 16, 250, 256, 128
    temperature = 0.05

    key = jax.random.PRNGKey(0)
    k_h, k_w = jax.random.split(key, 2)

    # "Backbone" last hidden state (bf16, as under torch autocast) + attention mask.
    hidden_states = jax.random.normal(k_h, (B, S, H), dtype=jnp.float32).astype(jnp.bfloat16)
    valid_lens = jnp.clip(S - 13 * jnp.arange(B, dtype=jnp.int32), 16, S)
    attention_mask = (jnp.arange(S)[None, :] < valid_lens[:, None]).astype(jnp.float32)

    # Projection head params (matches _init_head: Linear weight ~ N(0, 0.02), bias 0;
    # LayerNorm gamma=1, beta=0). Weight stored pre-transposed as (H, P).
    proj_w = 0.02 * jax.random.normal(k_w, (H, P), dtype=jnp.float32)
    proj_b = jnp.zeros((P,), jnp.float32)
    ln_gamma = jnp.ones((P,), jnp.float32)
    ln_beta = jnp.zeros((P,), jnp.float32)

    out = contrastive_forward(hidden_states, attention_mask, proj_w, proj_b,
                              ln_gamma, ln_beta, temperature=temperature,
                              batch_tile=8, seq_tile=128)
    out = jax.block_until_ready(out)
    assert bool(jnp.isfinite(out['loss'])), "non-finite loss"
    assert bool(jnp.all(jnp.isfinite(out['embeddings']))), "non-finite embeddings"
    assert bool(jnp.isfinite(out['metrics']['contrastive_accuracy']))
    assert bool(jnp.isfinite(out['metrics']['embedding_diversity']))
    print("KERNEL_OK")
</pallas_src>

<mosaic_0001>
module attributes {stable_mosaic.version = 11 : i64} {
  func.func @pool_sum_kernel(%arg0: i32, %arg1: i32, %arg2: memref<8x128x256xbf16, #tpu.memory_space<vmem>>, %arg3: memref<8x128xf32, #tpu.memory_space<vmem>>, %arg4: memref<8x256xf32, #tpu.memory_space<vmem>>) attributes {dimension_semantics = [#tpu.dimension_semantics<parallel>, #tpu.dimension_semantics<arbitrary>], iteration_bounds = array<i64: 2, 2>, scalar_prefetch = 0 : i64, scratch_operands = 0 : i64, tpu.core_type = #tpu.core_type<tc>, window_params = [{transform_indices = @transform_0, window_bounds = array<i64: 8, 128, 256>}, {transform_indices = @transform_1, window_bounds = array<i64: 8, 128>}, {transform_indices = @transform_2, window_bounds = array<i64: 8, 256>}]} {
    %c0_i32 = arith.constant 0 : i32
    %0 = arith.cmpi eq, %arg1, %c0_i32 : i32
    %1 = arith.extui %0 : i1 to i32
    %c0_i32_0 = arith.constant 0 : i32
    %2 = arith.cmpi ne, %1, %c0_i32_0 : i32
    scf.if %2 {
      %cst_9 = arith.constant 0.000000e+00 : f32
      %12 = vector.broadcast %cst_9 : f32 to vector<8x256xf32>
      %c0_10 = arith.constant 0 : index
      %c0_11 = arith.constant 0 : index
      %13 = vector.load %arg4[%c0_10, %c0_11] : memref<8x256xf32, #tpu.memory_space<vmem>>, vector<8x256xf32>
      tpu.vector_store %arg4[%c0_10, %c0_11], %12 {strides = array<i32>} : memref<8x256xf32, #tpu.memory_space<vmem>>, vector<8x256xf32>,
    } else {
    }
    %c0 = arith.constant 0 : index
    %c0_1 = arith.constant 0 : index
    %c0_2 = arith.constant 0 : index
    %3 = vector.load %arg2[%c0, %c0_1, %c0_2] : memref<8x128x256xbf16, #tpu.memory_space<vmem>>, vector<8x128x256xbf16>
    %c0_3 = arith.constant 0 : index
    %c0_4 = arith.constant 0 : index
    %4 = vector.load %arg3[%c0_3, %c0_4] : memref<8x128xf32, #tpu.memory_space<vmem>>, vector<8x128xf32>
    %5 = arith.truncf %4 : vector<8x128xf32> to vector<8x128xbf16>
    %6 = vector.shape_cast %5 : vector<8x128xbf16> to vector<8x1x128xbf16>
    %cst = arith.constant dense<0.000000e+00> : vector<8x1x256xf32>
    %7 = tpu.matmul %6, %3, %cst {dimension_numbers = #tpu.dot_dimension_numbers<[2], [1], [1], [2], [0, 0, 0, 1, 1, 2], [0], [0]>} : vector<8x1x128xbf16>, vector<8x128x256xbf16>, vector<8x1x256xf32> -> vector<8x1x256xf32>
    %c0_5 = arith.constant 0 : index
    %c0_6 = arith.constant 0 : index
    %8 = vector.load %arg4[%c0_5, %c0_6] : memref<8x256xf32, #tpu.memory_space<vmem>>, vector<8x256xf32>
    %9 = vector.shape_cast %7 : vector<8x1x256xf32> to vector<8x256xf32>
    %10 = arith.addf %8, %9 : vector<8x256xf32>
    %c0_7 = arith.constant 0 : index
    %c0_8 = arith.constant 0 : index
    %11 = vector.load %arg4[%c0_7, %c0_8] : memref<8x256xf32, #tpu.memory_space<vmem>>, vector<8x256xf32>
    tpu.vector_store %arg4[%c0_7, %c0_8], %10 {strides = array<i32>} : memref<8x256xf32, #tpu.memory_space<vmem>>, vector<8x256xf32>,
    return
  }
  func.func @transform_0(%arg0: i32, %arg1: i32) -> (i32, i32, i32) {
    %c0_i32 = arith.constant 0 : i32
    %c0_i32_0 = arith.constant 0 : i32
    return %arg0, %arg1, %c0_i32 : i32, i32, i32
  }
  func.func @transform_1(%arg0: i32, %arg1: i32) -> (i32, i32) {
    %c0_i32 = arith.constant 0 : i32
    return %arg0, %arg1 : i32, i32
  }
  func.func @transform_2(%arg0: i32, %arg1: i32) -> (i32, i32) {
    %c0_i32 = arith.constant 0 : i32
    %c0_i32_0 = arith.constant 0 : i32
    return %arg0, %c0_i32 : i32, i32
  }
}

</mosaic_0001>

<llo_original>
// kernel: tpu_custom_call.1
$region0: #{tpu_custom_call.1}
  #allocation0 [shape = 'u32[]', space=smem, size = 0x4, offset = 0x4, fixed_abs, tag = 'smem constant byte address 0x4 - core index']
  #allocation1 [shape = 'u32[144,128]{1,0:T(1,128)}', space=vmem, size = 0x12000, scoped, tag = 'internal scratch']
  #allocation8 [shape = 's32[]', space=sflag, size = 0x4, offset = 0, fixed_abs, tag = 'sflag constant byte address 0x0 - dummy sync flag']
  %s0 = inlined_call_operand.hbm [shape: bf16[16,256,256], index: 0, kind: input, shape index: {}]
  %s1 = inlined_call_operand.hbm [shape: f32[16,256], index: 1, kind: input, shape index: {}]
  %s2 = inlined_call_operand.hbm [shape: f32[16,256], index: 2, kind: output, shape index: {}]
  %s3 = sld [smem:[#allocation0]]
  $region53: #{tpu_custom_call.1} parent=0
    _
  %s5 = ssub.s32 1, %s3
  %s6 = scalar_select 0, %s5, %s3
  $region1: #{tpu_custom_call.1} parent=0
    #allocation2 [shape = 'u8[1048576]{0}', space=vmem, size = 0x100000, scoped, tag = 'input window, operand 0']
    #allocation3 [shape = 's32[2]{0}', space=sflag, size = 0x8, scoped, tag = 'scoped memory for tpu_custom_call.1']
    #allocation4 [shape = 's32[2]{0}', space=sflag, size = 0x8, scoped, tag = 'scoped memory for tpu_custom_call.1']
    #allocation5 [shape = 'u8[8192]{0}', space=vmem, size = 0x2000, scoped, tag = 'input window, operand 1']
    #allocation6 [shape = 's32[2]{0}', space=sflag, size = 0x8, scoped, tag = 'scoped memory for tpu_custom_call.1']
    #allocation7 [shape = 'u8[16384]{0}', space=vmem, size = 0x4000, scoped, tag = 'output window, operand 0']
    %7 = vsyncpa [#allocation3], 0
    %s8 = scalar_lea.sflag [#allocation3], 1
    %9 = vsyncpa %s8, 0
    %10 = vsyncpa [#allocation6], 0
    %s11 = scalar_lea.sflag [#allocation6], 1
    %12 = vsyncpa %s11, 0
    %13 = vsyncpa [#allocation4], 0
    %s14 = scalar_lea.sflag [#allocation4], 1
    %15 = vsyncpa %s14, 0
    loop: start=0, step=1, limit=6
    $region2: #{tpu_custom_call.1} parent=1 // loop_pre_header
      _
    $region3: #{tpu_custom_call.1} parent=1 // loop_header
      %s17 = sphi 0, %s21
      %p18 = scmp.ge.s32.totalorder %s17, 6
      %s24 = sphi 0, %s36
      %s25 = sphi 0, %s32
      %s26 = sphi 0, %s24
      %s27 = sphi 0, %s25
      %s28 = sphi 0, %s26
      %s29 = sphi 0, %s27
      %s41 = sphi 0, %s43
      %s44 = sphi 0, %s41
      %s45 = sphi 0, %s44
      %s61 = sphi 0, %s45
      %s69 = sphi 0, %s71
      %s72 = sphi 0, %s69
      %s73 = sphi 0, %s72
      %s89 = sphi 0, %s73
      %s95 = sphi 0, %s97
      %s98 = sphi 0, %s95
      %s99 = sphi 0, %s98
      %s115 = sphi 0, %s99
    $region4: #{tpu_custom_call.1} parent=1 // loop_header_branch
      %20 = sbr.rel (%p18) target = $region8
    $region5: #{tpu_custom_call.1} parent=1 // loop_body
      %s22 = ssub.s32 %s17, 1
      %s23 = ssub.s32 %s17, 2
      %s30 = sadd.s32 1, %s25
      %p31 = scmp.ge.s32.totalorder %s30, 2
      %s32 = scalar_select %p31, 0, %s30
      %s33 = sadd.s32 1, %s24
      %s34 = scalar_select %p31, %s33, %s24
      %p35 = scmp.ge.s32.totalorder %s34, 2
      %s36 = scalar_select %p35, 0, %s34
      %s37 = ssub.s32 %s24, %s36
      %s38 = ssub.s32 %s25, %s32
      %s39 = sor.u32 %s37, %s38
      %p40 = scmp.eq.s32.totalorder %s39, 0
      %s42 = sadd.s32 %s41, 1
      %s43 = scalar_select %p40, %s41, %s42
      %p46 = pneg %p40
      %p47 = scmp.eq.s32.totalorder %s17, 3
      %p48 = por %p46, %p47
      %p49 = scmp.ne.s32.totalorder %s41, %s44
      %p50 = scmp.eq.s32.totalorder %s17, 0
      %p51 = por %p49, %p50
      %p52 = scmp.ne.s32.totalorder %s41, %s44
      %p53 = scmp.eq.s32.totalorder %s22, 3
      %p54 = por %p52, %p53
      %p55 = scmp.ne.s32.totalorder %s44, %s45
      %p56 = scmp.eq.s32.totalorder %s22, 0
      %p57 = por %p55, %p56
      %p58 = scmp.ne.s32.totalorder %s44, %s45
      %p59 = scmp.eq.s32.totalorder %s23, 3
      %p60 = por %p58, %p59
      %p62 = scmp.ne.s32.totalorder %s45, %s61
      %p63 = scmp.eq.s32.totalorder %s23, 0
      %p64 = por %p62, %p63
      %s65 = ssub.s32 %s24, %s36
      %s66 = ssub.s32 %s25, %s32
      %s67 = sor.u32 %s65, %s66
      %p68 = scmp.eq.s32.totalorder %s67, 0
      %s70 = sadd.s32 %s69, 1
      %s71 = scalar_select %p68, %s69, %s70
      %p74 = pneg %p68
      %p75 = scmp.eq.s32.totalorder %s17, 3
      %p76 = por %p74, %p75
      %p77 = scmp.ne.s32.totalorder %s69, %s72
      %p78 = scmp.eq.s32.totalorder %s17, 0
      %p79 = por %p77, %p78
      %p80 = scmp.ne.s32.totalorder %s69, %s72
      %p81 = scmp.eq.s32.totalorder %s22, 3
      %p82 = por %p80, %p81
      %p83 = scmp.ne.s32.totalorder %s72, %s73
      %p84 = scmp.eq.s32.totalorder %s22, 0
      %p85 = por %p83, %p84
      %p86 = scmp.ne.s32.totalorder %s72, %s73
      %p87 = scmp.eq.s32.totalorder %s23, 3
      %p88 = por %p86, %p87
      %p90 = scmp.ne.s32.totalorder %s73, %s89
      %p91 = scmp.eq.s32.totalorder %s23, 0
      %p92 = por %p90, %p91
      %s93 = ssub.s32 %s24, %s36
      %p94 = scmp.eq.s32.totalorder %s93, 0
      %s96 = sadd.s32 %s95, 1
      %s97 = scalar_select %p94, %s95, %s96
      %p100 = pneg %p94
      %p101 = scmp.eq.s32.totalorder %s17, 3
      %p102 = por %p100, %p101
      %p103 = scmp.ne.s32.totalorder %s95, %s98
      %p104 = scmp.eq.s32.totalorder %s17, 0
      %p105 = por %p103, %p104
      %p106 = scmp.ne.s32.totalorder %s95, %s98
      %p107 = scmp.eq.s32.totalorder %s22, 3
      %p108 = por %p106, %p107
      %p109 = scmp.ne.s32.totalorder %s98, %s99
      %p110 = scmp.eq.s32.totalorder %s22, 0
      %p111 = por %p109, %p110
      %p112 = scmp.ne.s32.totalorder %s98, %s99
      %p113 = scmp.eq.s32.totalorder %s23, 3
      %p114 = por %p112, %p113
      %p116 = scmp.ne.s32.totalorder %s99, %s115
      %p117 = scmp.eq.s32.totalorder %s23, 0
      %p118 = por %p116, %p117
      %p119 = scmp.le.s32.totalorder 1, %s17
      %p120 = scmp.lt.s32.totalorder %s17, 5
      %p121 = pnand %p119, %p120
      %p122 = pneg %p121
      // Predicated region
      $region9: #{tpu_custom_call.1} parent=5 // pred_check
        _
      $region10: #{tpu_custom_call.1} parent=5 // pred_check_branch
        %124 = sbr.rel (%p121) target = $region12
      $region11: #{tpu_custom_call.1} parent=5 // pred_region
        %s125 = ssub.s32 %s17, 1
      $region12: #{tpu_custom_call.1} parent=5 // pred_fallthru
        _
      %p126 = scmp.lt.s32.totalorder %s17, 4
      // Predicated region
      $region13: #{tpu_custom_call.1} parent=5 // pred_check
        %p127 = pneg %p126
      $region14: #{tpu_custom_call.1} parent=5 // pred_check_branch
        %129 = sbr.rel (%p127) target = $region16
      $region15: #{tpu_custom_call.1} parent=5 // pred_region
        // Predicated region
        $region17: #{tpu_custom_call.1} parent=15 // pred_check
          %p130 = pneg %p51
        $region18: #{tpu_custom_call.1} parent=15 // pred_check_branch
          %132 = sbr.rel (%p130) target = $region20
        $region19: #{tpu_custom_call.1} parent=15 // pred_region
          #allocation9 [shape = 'u32[6]{0}', space=smem, size = 0x18, scoped, tag = 'DMA stride descriptor']
          %s133 = sand.u32 %s41, 1
          %s134 = scalar_lea.sflag [#allocation3], %s133
          %s135 = sand.u32 %s41, 1
          %s136 = smul.addr %s135, 1024
          %s137 = scalar_lea.vmem [#allocation2], %s136
          %s138 = smul.u32 8, %s24
          %s139 = smul.u32 16, %s25
          %s141 = ssub.s32 16384, 16384
          %142 = vsyncadd %s134, %s141
          %s143 = smul.addr %s139, 2
          %s144 = smul.addr %s138, 64
          %s145 = sadd.s32 %s143, %s144
          %s146 = smul.addr %s145, 64
          %s147 = scalar_lea.hbm %s0, %s146
          %s149 = sshll.u32 1, 14
          %s150 = sxor.u32 4294967295, %s149
          %s152 = sld [smem:[#allocation0]]
          %s153 = sadd.s32 2, %s152
          %s155 = sshll.u32 7, 26
          %s156 = sxor.u32 4294967295, %s155
          %s157 = sand.u32 0, %s156
          %s158 = sshll.u32 %s153, 26
          %s159 = sor.u32 %s157, %s158
          %s160 = sshll.u32 %s137, 4
          %s161 = int_to_ptr.vmem [resolvable:$true] %s160
          %167 = sst [smem:[#allocation9]] 4096
          %s168 = scalar_lea.smem [#allocation9], 1
          %169 = sst [smem:[%s168]] 2048
          %s170 = scalar_lea.smem [#allocation9], 2
          %171 = sst [smem:[%s170]] 16
          %s172 = scalar_lea.smem [#allocation9], 3
          %173 = sst [smem:[%s172]] 128
          %s174 = scalar_lea.smem [#allocation9], 4
          %175 = sst [smem:[%s174]] 128
          %s176 = scalar_lea.smem [#allocation9], 5
          %177 = sst [smem:[%s176]] 8
          %179 = dma.general %s147, 16384, %s161, %s134, [#allocation8], [#allocation9], %s159, 0
        $region20: #{tpu_custom_call.1} parent=15 // pred_fallthru
          _
        // Predicated region
        $region21: #{tpu_custom_call.1} parent=15 // pred_check
          %p180 = pneg %p79
        $region22: #{tpu_custom_call.1} parent=15 // pred_check_branch
          %182 = sbr.rel (%p180) target = $region24
        $region23: #{tpu_custom_call.1} parent=15 // pred_region
          %s183 = sand.u32 %s69, 1
          %s184 = scalar_lea.sflag [#allocation6], %s183
          %s185 = sand.u32 %s69, 1
          %s186 = smul.addr %s185, 8
          %s187 = scalar_lea.vmem [#allocation5], %s186
          %s189 = ssub.s32 128, 128
          %190 = vsyncadd %s184, %s189
          %s191 = smul.addr %s24, 2
          %s192 = sadd.s32 %s25, %s191
          %s193 = smul.addr %s192, 128
          %s194 = scalar_lea.hbm %s1, %s193
          %s196 = sshll.u32 %s187, 4
          %s197 = int_to_ptr.vmem [resolvable:$true] %s196
          %199 = dma.hbm_to_vmem [thread:$0]  %s194, 128, %s197, %s184
        $region24: #{tpu_custom_call.1} parent=15 // pred_fallthru
          _
      $region16: #{tpu_custom_call.1} parent=5 // pred_fallthru
        _
      %p200 = scmp.le.s32.totalorder 1, %s17
      %p201 = scmp.lt.s32.totalorder %s17, 5
      %p202 = pnand %p200, %p201
      %p203 = pneg %p202
      // Predicated region
      $region25: #{tpu_custom_call.1} parent=5 // pred_check
        _
      $region26: #{tpu_custom_call.1} parent=5 // pred_check_branch
        %205 = sbr.rel (%p202) target = $region28
      $region27: #{tpu_custom_call.1} parent=5 // pred_region
        %s206 = ssub.s32 %s17, 1
        %s207 = sand.u32 %s44, 1
        %s208 = scalar_lea.sflag [#allocation3], %s207
        %s209 = sand.u32 %s44, 1
        %s210 = smul.addr %s209, 1024
        %s211 = scalar_lea.vmem [#allocation2], %s210
        // Predicated region
        $region29: #{tpu_custom_call.1} parent=27 // pred_check
          %p212 = pneg %p57
        $region30: #{tpu_custom_call.1} parent=27 // pred_check_branch
          %214 = sbr.rel (%p212) target = $region32
        $region31: #{tpu_custom_call.1} parent=27 // pred_region
          %215 = dma.done %s208, 16384
        $region32: #{tpu_custom_call.1} parent=27 // pred_fallthru
          _
        %s216 = sand.u32 %s72, 1
        %s217 = scalar_lea.sflag [#allocation6], %s216
        %s218 = sand.u32 %s72, 1
        %s219 = smul.addr %s218, 8
        %s220 = scalar_lea.vmem [#allocation5], %s219
        // Predicated region
        $region33: #{tpu_custom_call.1} parent=27 // pred_check
          %p221 = pneg %p85
        $region34: #{tpu_custom_call.1} parent=27 // pred_check_branch
          %223 = sbr.rel (%p221) target = $region36
        $region35: #{tpu_custom_call.1} parent=27 // pred_region
          %224 = dma.done %s217, 128
        $region36: #{tpu_custom_call.1} parent=27 // pred_fallthru
          _
        %s225 = sand.u32 %s44, 1
        %s226 = scalar_lea.sflag [#allocation3], %s225
        %s227 = sand.u32 %s44, 1
        %s228 = smul.addr %s227, 1024
        %s229 = scalar_lea.vmem [#allocation2], %s228
        %p230 = pneg %p57
        %p231 = pneg %p54
        %s232 = sand.u32 %s72, 1
        %s233 = scalar_lea.sflag [#allocation6], %s232
        %s234 = sand.u32 %s72, 1
        %s235 = smul.addr %s234, 8
        %s236 = scalar_lea.vmem [#allocation5], %s235
        %p237 = pneg %p85
        %p238 = pneg %p82
        %p239 = pneg %p111
        %p240 = pneg %p108
        %s241 = sand.u32 %s98, 1
        %s242 = scalar_lea.sflag [#allocation4], %s241
        %s243 = sand.u32 %s98, 1
        %s244 = smul.addr %s243, 16
        %s245 = scalar_lea.vmem [#allocation7], %s244
        %s246 = smul.u32 8, %s26
        %s247 = smul.u32 16, %s27
        %p249 = scmp.eq.s32.totalorder %s27, 0
        // Predicated region
        $region37: #{tpu_custom_call.1} parent=27 // pred_check
          %p250 = pneg %p249
        $region38: #{tpu_custom_call.1} parent=27 // pred_check_branch
          %252 = sbr.rel (%p250) target = $region40
        $region39: #{tpu_custom_call.1} parent=27 // pred_region
          %253 = vst [vmem:[%s245] sm:$0xff] 0.0
          %254 = vst [vmem:[%s245 + $0x8] sm:$0xff] 0.0
        $region40: #{tpu_custom_call.1} parent=27 // pred_fallthru
          _
        %v255 = vld [vmem:[%s211] sm:$0xff]
        %v256 = vld [vmem:[%s211 + $0x8] sm:$0xff]
        %v257 = vld [vmem:[%s211 + $0x10] sm:$0xff]
        %v258 = vld [vmem:[%s211 + $0x18] sm:$0xff]
        %v259 = vld [vmem:[%s211 + $0x20] sm:$0xff]
        %v260 = vld [vmem:[%s211 + $0x28] sm:$0xff]
        %v261 = vld [vmem:[%s211 + $0x30] sm:$0xff]
        %v262 = vld [vmem:[%s211 + $0x38] sm:$0xff]
        %v263 = vld [vmem:[%s211 + $0x40] sm:$0xff]
        %v264 = vld [vmem:[%s211 + $0x48] sm:$0xff]
        %v265 = vld [vmem:[%s211 + $0x50] sm:$0xff]
        %v266 = vld [vmem:[%s211 + $0x58] sm:$0xff]
        %v267 = vld [vmem:[%s211 + $0x60] sm:$0xff]
        %v268 = vld [vmem:[%s211 + $0x68] sm:$0xff]
        %v269 = vld [vmem:[%s211 + $0x70] sm:$0xff]
        %v270 = vld [vmem:[%s211 + $0x78] sm:$0xff]
        %v271 = vld [vmem:[%s211 + $0x80] sm:$0xff]
        %v272 = vld [vmem:[%s211 + $0x88] sm:$0xff]
        %v273 = vld [vmem:[%s211 + $0x90] sm:$0xff]
        %v274 = vld [vmem:[%s211 + $0x98] sm:$0xff]
        %v275 = vld [vmem:[%s211 + $0xa0] sm:$0xff]
        %v276 = vld [vmem:[%s211 + $0xa8] sm:$0xff]
        %v277 = vld [vmem:[%s211 + $0xb0] sm:$0xff]
        %v278 = vld [vmem:[%s211 + $0xb8] sm:$0xff]
        %v279 = vld [vmem:[%s211 + $0xc0] sm:$0xff]
        %v280 = vld [vmem:[%s211 + $0xc8] sm:$0xff]
        %v281 = vld [vmem:[%s211 + $0xd0] sm:$0xff]
        %v282 = vld [vmem:[%s211 + $0xd8] sm:$0xff]
        %v283 = vld [vmem:[%s211 + $0xe0] sm:$0xff]
        %v284 = vld [vmem:[%s211 + $0xe8] sm:$0xff]
        %v285 = vld [vmem:[%s211 + $0xf0] sm:$0xff]
        %v286 = vld [vmem:[%s211 + $0xf8] sm:$0xff]
        %v287 = vld [vmem:[%s211 + $0x100] sm:$0xff]
        %v288 = vld [vmem:[%s211 + $0x108] sm:$0xff]
        %v289 = vld [vmem:[%s211 + $0x110] sm:$0xff]
        %v290 = vld [vmem:[%s211 + $0x118] sm:$0xff]
        %v291 = vld [vmem:[%s211 + $0x120] sm:$0xff]
        %v292 = vld [vmem:[%s211 + $0x128] sm:$0xff]
        %v293 = vld [vmem:[%s211 + $0x130] sm:$0xff]
        %v294 = vld [vmem:[%s211 + $0x138] sm:$0xff]
        %v295 = vld [vmem:[%s211 + $0x140] sm:$0xff]
        %v296 = vld [vmem:[%s211 + $0x148] sm:$0xff]
        %v297 = vld [vmem:[%s211 + $0x150] sm:$0xff]
        %v298 = vld [vmem:[%s211 + $0x158] sm:$0xff]
        %v299 = vld [vmem:[%s211 + $0x160] sm:$0xff]
        %v300 = vld [vmem:[%s211 + $0x168] sm:$0xff]
        %v301 = vld [vmem:[%s211 + $0x170] sm:$0xff]
        %v302 = vld [vmem:[%s211 + $0x178] sm:$0xff]
        %v303 = vld [vmem:[%s211 + $0x180] sm:$0xff]
        %v304 = vld [vmem:[%s211 + $0x188] sm:$0xff]
        %v305 = vld [vmem:[%s211 + $0x190] sm:$0xff]
        %v306 = vld [vmem:[%s211 + $0x198] sm:$0xff]
        %v307 = vld [vmem:[%s211 + $0x1a0] sm:$0xff]
        %v308 = vld [vmem:[%s211 + $0x1a8] sm:$0xff]
        %v309 = vld [vmem:[%s211 + $0x1b0] sm:$0xff]
        %v310 = vld [vmem:[%s211 + $0x1b8] sm:$0xff]
        %v311 = vld [vmem:[%s211 + $0x1c0] sm:$0xff]
        %v312 = vld [vmem:[%s211 + $0x1c8] sm:$0xff]
        %v313 = vld [vmem:[%s211 + $0x1d0] sm:$0xff]
        %v314 = vld [vmem:[%s211 + $0x1d8] sm:$0xff]
        %v315 = vld [vmem:[%s211 + $0x1e0] sm:$0xff]
        %v316 = vld [vmem:[%s211 + $0x1e8] sm:$0xff]
        %v317 = vld [vmem:[%s211 + $0x1f0] sm:$0xff]
        %v318 = vld [vmem:[%s211 + $0x1f8] sm:$0xff]
        %v319 = vld [vmem:[%s211 + $0x200] sm:$0xff]
        %v320 = vld [vmem:[%s211 + $0x208] sm:$0xff]
        %v321 = vld [vmem:[%s211 + $0x210] sm:$0xff]
        %v322 = vld [vmem:[%s211 + $0x218] sm:$0xff]
        %v323 = vld [vmem:[%s211 + $0x220] sm:$0xff]
        %v324 = vld [vmem:[%s211 + $0x228] sm:$0xff]
        %v325 = vld [vmem:[%s211 + $0x230] sm:$0xff]
        %v326 = vld [vmem:[%s211 + $0x238] sm:$0xff]
        %v327 = vld [vmem:[%s211 + $0x240] sm:$0xff]
        %v328 = vld [vmem:[%s211 + $0x248] sm:$0xff]
        %v329 = vld [vmem:[%s211 + $0x250] sm:$0xff]
        %v330 = vld [vmem:[%s211 + $0x258] sm:$0xff]
        %v331 = vld [vmem:[%s211 + $0x260] sm:$0xff]
        %v332 = vld [vmem:[%s211 + $0x268] sm:$0xff]
        %v333 = vld [vmem:[%s211 + $0x270] sm:$0xff]
        %v334 = vld [vmem:[%s211 + $0x278] sm:$0xff]
        %v335 = vld [vmem:[%s211 + $0x280] sm:$0xff]
        %v336 = vld [vmem:[%s211 + $0x288] sm:$0xff]
        %v337 = vld [vmem:[%s211 + $0x290] sm:$0xff]
        %v338 = vld [vmem:[%s211 + $0x298] sm:$0xff]
        %v339 = vld [vmem:[%s211 + $0x2a0] sm:$0xff]
        %v340 = vld [vmem:[%s211 + $0x2a8] sm:$0xff]
        %v341 = vld [vmem:[%s211 + $0x2b0] sm:$0xff]
        %v342 = vld [vmem:[%s211 + $0x2b8] sm:$0xff]
        %v343 = vld [vmem:[%s211 + $0x2c0] sm:$0xff]
        %v344 = vld [vmem:[%s211 + $0x2c8] sm:$0xff]
        %v345 = vld [vmem:[%s211 + $0x2d0] sm:$0xff]
        %v346 = vld [vmem:[%s211 + $0x2d8] sm:$0xff]
        %v347 = vld [vmem:[%s211 + $0x2e0] sm:$0xff]
        %v348 = vld [vmem:[%s211 + $0x2e8] sm:$0xff]
        %v349 = vld [vmem:[%s211 + $0x2f0] sm:$0xff]
        %v350 = vld [vmem:[%s211 + $0x2f8] sm:$0xff]
        %v351 = vld [vmem:[%s211 + $0x300] sm:$0xff]
        %v352 = vld [vmem:[%s211 + $0x308] sm:$0xff]
        %v353 = vld [vmem:[%s211 + $0x310] sm:$0xff]
        %v354 = vld [vmem:[%s211 + $0x318] sm:$0xff]
        %v355 = vld [vmem:[%s211 + $0x320] sm:$0xff]
        %v356 = vld [vmem:[%s211 + $0x328] sm:$0xff]
        %v357 = vld [vmem:[%s211 + $0x330] sm:$0xff]
        %v358 = vld [vmem:[%s211 + $0x338] sm:$0xff]
        %v359 = vld [vmem:[%s211 + $0x340] sm:$0xff]
        %v360 = vld [vmem:[%s211 + $0x348] sm:$0xff]
        %v361 = vld [vmem:[%s211 + $0x350] sm:$0xff]
        %v362 = vld [vmem:[%s211 + $0x358] sm:$0xff]
        %v363 = vld [vmem:[%s211 + $0x360] sm:$0xff]
        %v364 = vld [vmem:[%s211 + $0x368] sm:$0xff]
        %v365 = vld [vmem:[%s211 + $0x370] sm:$0xff]
        %v366 = vld [vmem:[%s211 + $0x378] sm:$0xff]
        %v367 = vld [vmem:[%s211 + $0x380] sm:$0xff]
        %v368 = vld [vmem:[%s211 + $0x388] sm:$0xff]
        %v369 = vld [vmem:[%s211 + $0x390] sm:$0xff]
        %v370 = vld [vmem:[%s211 + $0x398] sm:$0xff]
        %v371 = vld [vmem:[%s211 + $0x3a0] sm:$0xff]
        %v372 = vld [vmem:[%s211 + $0x3a8] sm:$0xff]
        %v373 = vld [vmem:[%s211 + $0x3b0] sm:$0xff]
        %v374 = vld [vmem:[%s211 + $0x3b8] sm:$0xff]
        %v375 = vld [vmem:[%s211 + $0x3c0] sm:$0xff]
        %v376 = vld [vmem:[%s211 + $0x3c8] sm:$0xff]
        %v377 = vld [vmem:[%s211 + $0x3d0] sm:$0xff]
        %v378 = vld [vmem:[%s211 + $0x3d8] sm:$0xff]
        %v379 = vld [vmem:[%s211 + $0x3e0] sm:$0xff]
        %v380 = vld [vmem:[%s211 + $0x3e8] sm:$0xff]
        %v381 = vld [vmem:[%s211 + $0x3f0] sm:$0xff]
        %v382 = vld [vmem:[%s211 + $0x3f8] sm:$0xff]
        %v383 = vld [vmem:[%s220] sm:$0xff]
        %v384 = vpack.c.bf16 %v383, %v383
        %v387 = vunpack.c.l.s4 1966171168
        %v388 = vunpack.c.0.s8 %v387
        %v389 = vlaneseq
        %v390 = vshrl.u32 %v389, 7
        %v391 = vsub.s32 %v388, %v390
        %v392 = vrot.slane %v384, %v391
        %v393 = vcombine.high %v392, %v392
        %v395 = vunpack.c.l.s4 1966171168
        %v396 = vunpack.c.0.s8 %v395
        %v397 = vlaneseq
        %v398 = vshrl.u32 %v397, 7
        %v399 = vsub.s32 %v396, %v398
        %v400 = vrot.slane %v392, %v399
        %v402 = vunpack.c.l.s4 1966171168
        %v403 = vunpack.c.0.s8 %v402
        %v404 = vlaneseq
        %v405 = vshrl.u32 %v404, 7
        %v406 = vsub.s32 %v403, %v405
        %v407 = vrot.slane %v393, %v406
        %v408 = vcombine.high %v400, %v400
        %v409 = vcombine.high %v407, %v407
        %v410 = vunpack.i.l.s16 %v400
        %v411 = vunpack.i.h.s16 %v400
        %v412 = vunpack.i.l.s16 %v407
        %v413 = vunpack.i.h.s16 %v407
        %v414 = vunpack.i.l.s16 %v408
        %v415 = vunpack.i.h.s16 %v408
        %v416 = vunpack.i.l.s16 %v409
        %v417 = vunpack.i.h.s16 %v409
        %v418 = vpack.i.b16 %v410, %v410
        %v419 = vlaneseq
        %v420 = vshrl.u32 %v419, 7
        %v421 = vsub.s32 0, %v420
        %v422 = vrot.slane %v418, %v421
        %v440 = vunpack.c.l.b16 %v255
        %v441 = vunpack.c.h.b16 %v255
        %v442 = vunpack.c.l.b16 %v256
        %v443 = vunpack.c.h.b16 %v256
        %v444 = vunpack.c.l.b16 %v257
        %v445 = vunpack.c.h.b16 %v257
        %v446 = vunpack.c.l.b16 %v258
        %v447 = vunpack.c.h.b16 %v258
        %v448 = vunpack.c.l.b16 %v259
        %v449 = vunpack.c.h.b16 %v259
        %v450 = vunpack.c.l.b16 %v260
        %v451 = vunpack.c.h.b16 %v260
        %v452 = vunpack.c.l.b16 %v261
        %v453 = vunpack.c.h.b16 %v261
        %v454 = vunpack.c.l.b16 %v262
        %v455 = vunpack.c.h.b16 %v262
        %v456 = vunpack.c.l.b16 %v263
        %v457 = vunpack.c.h.b16 %v263
        %v458 = vunpack.c.l.b16 %v264
        %v459 = vunpack.c.h.b16 %v264
        %v460 = vunpack.c.l.b16 %v265
        %v461 = vunpack.c.h.b16 %v265
        %v462 = vunpack.c.l.b16 %v266
        %v463 = vunpack.c.h.b16 %v266
        %v464 = vunpack.c.l.b16 %v267
        %v465 = vunpack.c.h.b16 %v267
        %v466 = vunpack.c.l.b16 %v268
        %v467 = vunpack.c.h.b16 %v268
        %v468 = vunpack.c.l.b16 %v269
        %v469 = vunpack.c.h.b16 %v269
        %v470 = vunpack.c.l.b16 %v270
        %v471 = vunpack.c.h.b16 %v270
        %v472 = vpack.c.b16 %v442, %v440
        %v473 = vpack.c.b16 %v443, %v441
        %v474 = vpack.c.b16 %v446, %v444
        %v475 = vpack.c.b16 %v447, %v445
        %v476 = vpack.c.b16 %v450, %v448
        %v477 = vpack.c.b16 %v451, %v449
        %v478 = vpack.c.b16 %v454, %v452
        %v479 = vpack.c.b16 %v455, %v453
        %v480 = vpack.c.b16 %v458, %v456
        %v481 = vpack.c.b16 %v459, %v457
        %v482 = vpack.c.b16 %v462, %v460
        %v483 = vpack.c.b16 %v463, %v461
        %v484 = vpack.c.b16 %v466, %v464
        %v485 = vpack.c.b16 %v467, %v465
        %v486 = vpack.c.b16 %v470, %v468
        %v487 = vpack.c.b16 %v471, %v469
        %504 = vmatprep.subr.bf16.mxu0 %v473
        %505 = vmatpush1.bf16.msra.mxu0 %v472
        %506 = vmatprep.subr.bf16.mxu0 %v475
        %507 = vmatpush1.bf16.msra.mxu0 %v474
        %508 = vmatprep.subr.bf16.mxu0 %v477
        %509 = vmatpush1.bf16.msra.mxu0 %v476
        %510 = vmatprep.subr.bf16.mxu0 %v479
        %511 = vmatpush1.bf16.msra.mxu0 %v478
        %512 = vmatprep.subr.bf16.mxu0 %v481
        %513 = vmatpush1.bf16.msra.mxu0 %v480
        %514 = vmatprep.subr.bf16.mxu0 %v483
        %515 = vmatpush1.bf16.msra.mxu0 %v482
        %516 = vmatprep.subr.bf16.mxu0 %v485
        %517 = vmatpush1.bf16.msra.mxu0 %v484
        %518 = vmatprep.subr.bf16.mxu0 %v487
        %519 = vmatpush1.bf16.msra.mxu0 %v486
        %520 = vmatprep.subr.bf16.mxu0 0
        %521 = vmatpush1.bf16.msra.mxu0 0
        %522 = vmatprep.subr.bf16.mxu0 0
        %523 = vmatpush1.bf16.msra.mxu0 0
        %524 = vmatprep.subr.bf16.mxu0 0
        %525 = vmatpush1.bf16.msra.mxu0 0
        %526 = vmatprep.subr.bf16.mxu0 0
        %527 = vmatpush1.bf16.msra.mxu0 0
        %528 = vmatprep.subr.bf16.mxu0 0
        %529 = vmatpush1.bf16.msra.mxu0 0
        %530 = vmatprep.subr.bf16.mxu0 0
        %531 = vmatpush1.bf16.msra.mxu0 0
        %532 = vmatprep.subr.bf16.mxu0 0
        %533 = vmatpush1.bf16.msra.mxu0 0
        %534 = vmatprep.subr.bf16.mxu0 0
        %535 = vmatpush1.bf16.msra.mxu0 0
        %536 = vmatprep.mubr.bf16.mxu0 0
        %537 = vmatmul.mubr.bf16.gmra.mrb[0].mxu0 %v422
        %v538 = vpop.f32.mrb[0].mxu0
        %v539 = vadd.f32 0.0, %v538
        %v540 = vpop.f32.mrb[0].mxu0
        %v541 = vadd.f32 0.0, %v540
        %v542 = vpop.f32.mrb[0].mxu0
        %v543 = vpop.f32.mrb[0].mxu0
        %544 = vdwg.mxu0
        %v545 = vpack.i.b16 %v411, %v411
        %v546 = vlaneseq
        %v547 = vshrl.u32 %v546, 7
        %v548 = vsub.s32 0, %v547
        %v549 = vrot.slane %v545, %v548
        %v567 = vunpack.c.l.b16 %v271
        %v568 = vunpack.c.h.b16 %v271
        %v569 = vunpack.c.l.b16 %v272
        %v570 = vunpack.c.h.b16 %v272
        %v571 = vunpack.c.l.b16 %v273
        %v572 = vunpack.c.h.b16 %v273
        %v573 = vunpack.c.l.b16 %v274
        %v574 = vunpack.c.h.b16 %v274
        %v575 = vunpack.c.l.b16 %v275
        %v576 = vunpack.c.h.b16 %v275
        %v577 = vunpack.c.l.b16 %v276
        %v578 = vunpack.c.h.b16 %v276
        %v579 = vunpack.c.l.b16 %v277
        %v580 = vunpack.c.h.b16 %v277
        %v581 = vunpack.c.l.b16 %v278
        %v582 = vunpack.c.h.b16 %v278
        %v583 = vunpack.c.l.b16 %v279
        %v584 = vunpack.c.h.b16 %v279
        %v585 = vunpack.c.l.b16 %v280
        %v586 = vunpack.c.h.b16 %v280
        %v587 = vunpack.c.l.b16 %v281
        %v588 = vunpack.c.h.b16 %v281
        %v589 = vunpack.c.l.b16 %v282
        %v590 = vunpack.c.h.b16 %v282
        %v591 = vunpack.c.l.b16 %v283
        %v592 = vunpack.c.h.b16 %v283
        %v593 = vunpack.c.l.b16 %v284
        %v594 = vunpack.c.h.b16 %v284
        %v595 = vunpack.c.l.b16 %v285
        %v596 = vunpack.c.h.b16 %v285
        %v597 = vunpack.c.l.b16 %v286
        %v598 = vunpack.c.h.b16 %v286
        %v599 = vpack.c.b16 %v569, %v567
        %v600 = vpack.c.b16 %v570, %v568
        %v601 = vpack.c.b16 %v573, %v571
        %v602 = vpack.c.b16 %v574, %v572
        %v603 = vpack.c.b16 %v577, %v575
        %v604 = vpack.c.b16 %v578, %v576
        %v605 = vpack.c.b16 %v581, %v579
        %v606 = vpack.c.b16 %v582, %v580
        %v607 = vpack.c.b16 %v585, %v583
        %v608 = vpack.c.b16 %v586, %v584
        %v609 = vpack.c.b16 %v589, %v587
        %v610 = vpack.c.b16 %v590, %v588
        %v611 = vpack.c.b16 %v593, %v591
        %v612 = vpack.c.b16 %v594, %v592
        %v613 = vpack.c.b16 %v597, %v595
        %v614 = vpack.c.b16 %v598, %v596
        %631 = vmatprep.subr.bf16.mxu0 %v600
        %632 = vmatpush1.bf16.msra.mxu0 %v599
        %633 = vmatprep.subr.bf16.mxu0 %v602
        %634 = vmatpush1.bf16.msra.mxu0 %v601
        %635 = vmatprep.subr.bf16.mxu0 %v604
        %636 = vmatpush1.bf16.msra.mxu0 %v603
        %637 = vmatprep.subr.bf16.mxu0 %v606
        %638 = vmatpush1.bf16.msra.mxu0 %v605
        %639 = vmatprep.subr.bf16.mxu0 %v608
        %640 = vmatpush1.bf16.msra.mxu0 %v607
        %641 = vmatprep.subr.bf16.mxu0 %v610
        %642 = vmatpush1.bf16.msra.mxu0 %v609
        %643 = vmatprep.subr.bf16.mxu0 %v612
        %644 = vmatpush1.bf16.msra.mxu0 %v611
        %645 = vmatprep.subr.bf16.mxu0 %v614
        %646 = vmatpush1.bf16.msra.mxu0 %v613
        %647 = vmatprep.subr.bf16.mxu0 0
        %648 = vmatpush1.bf16.msra.mxu0 0
        %649 = vmatprep.subr.bf16.mxu0 0
        %650 = vmatpush1.bf16.msra.mxu0 0
        %651 = vmatprep.subr.bf16.mxu0 0
        %652 = vmatpush1.bf16.msra.mxu0 0
        %653 = vmatprep.subr.bf16.mxu0 0
        %654 = vmatpush1.bf16.msra.mxu0 0
        %655 = vmatprep.subr.bf16.mxu0 0
        %656 = vmatpush1.bf16.msra.mxu0 0
        %657 = vmatprep.subr.bf16.mxu0 0
        %658 = vmatpush1.bf16.msra.mxu0 0
        %659 = vmatprep.subr.bf16.mxu0 0
        %660 = vmatpush1.bf16.msra.mxu0 0
        %661 = vmatprep.subr.bf16.mxu0 0
        %662 = vmatpush1.bf16.msra.mxu0 0
        %663 = vmatprep.mubr.bf16.mxu0 0
        %664 = vmatmul.mubr.bf16.gmra.mrb[0].mxu0 %v549
        %v665 = vpop.f32.mrb[0].mxu0
        %v666 = vadd.f32 0.0, %v665
        %v667 = vpop.f32.mrb[0].mxu0
        %v668 = vadd.f32 0.0, %v667
        %v669 = vpop.f32.mrb[0].mxu0
        %v670 = vpop.f32.mrb[0].mxu0
        %671 = vdwg.mxu0
        %v672 = vpack.i.b16 %v412, %v412
        %v673 = vlaneseq
        %v674 = vshrl.u32 %v673, 7
        %v675 = vsub.s32 0, %v674
        %v676 = vrot.slane %v672, %v675
        %v694 = vunpack.c.l.b16 %v287
        %v695 = vunpack.c.h.b16 %v287
        %v696 = vunpack.c.l.b16 %v288
        %v697 = vunpack.c.h.b16 %v288
        %v698 = vunpack.c.l.b16 %v289
        %v699 = vunpack.c.h.b16 %v289
        %v700 = vunpack.c.l.b16 %v290
        %v701 = vunpack.c.h.b16 %v290
        %v702 = vunpack.c.l.b16 %v291
        %v703 = vunpack.c.h.b16 %v291
        %v704 = vunpack.c.l.b16 %v292
        %v705 = vunpack.c.h.b16 %v292
        %v706 = vunpack.c.l.b16 %v293
        %v707 = vunpack.c.h.b16 %v293
        %v708 = vunpack.c.l.b16 %v294
        %v709 = vunpack.c.h.b16 %v294
        %v710 = vunpack.c.l.b16 %v295
        %v711 = vunpack.c.h.b16 %v295
        %v712 = vunpack.c.l.b16 %v296
        %v713 = vunpack.c.h.b16 %v296
        %v714 = vunpack.c.l.b16 %v297
        %v715 = vunpack.c.h.b16 %v297
        %v716 = vunpack.c.l.b16 %v298
        %v717 = vunpack.c.h.b16 %v298
        %v718 = vunpack.c.l.b16 %v299
        %v719 = vunpack.c.h.b16 %v299
        %v720 = vunpack.c.l.b16 %v300
        %v721 = vunpack.c.h.b16 %v300
        %v722 = vunpack.c.l.b16 %v301
        %v723 = vunpack.c.h.b16 %v301
        %v724 = vunpack.c.l.b16 %v302
        %v725 = vunpack.c.h.b16 %v302
        %v726 = vpack.c.b16 %v696, %v694
        %v727 = vpack.c.b16 %v697, %v695
        %v728 = vpack.c.b16 %v700, %v698
        %v729 = vpack.c.b16 %v701, %v699
        %v730 = vpack.c.b16 %v704, %v702
        %v731 = vpack.c.b16 %v705, %v703
        %v732 = vpack.c.b16 %v708, %v706
        %v733 = vpack.c.b16 %v709, %v707
        %v734 = vpack.c.b16 %v712, %v710
        %v735 = vpack.c.b16 %v713, %v711
        %v736 = vpack.c.b16 %v716, %v714
        %v737 = vpack.c.b16 %v717, %v715
        %v738 = vpack.c.b16 %v720, %v718
        %v739 = vpack.c.b16 %v721, %v719
        %v740 = vpack.c.b16 %v724, %v722
        %v741 = vpack.c.b16 %v725, %v723
        %758 = vmatprep.subr.bf16.mxu0 %v727
        %759 = vmatpush1.bf16.msra.mxu0 %v726
        %760 = vmatprep.subr.bf16.mxu0 %v729
        %761 = vmatpush1.bf16.msra.mxu0 %v728
        %762 = vmatprep.subr.bf16.mxu0 %v731
        %763 = vmatpush1.bf16.msra.mxu0 %v730
        %764 = vmatprep.subr.bf16.mxu0 %v733
        %765 = vmatpush1.bf16.msra.mxu0 %v732
        %766 = vmatprep.subr.bf16.mxu0 %v735
        %767 = vmatpush1.bf16.msra.mxu0 %v734
        %768 = vmatprep.subr.bf16.mxu0 %v737
        %769 = vmatpush1.bf16.msra.mxu0 %v736
        %770 = vmatprep.subr.bf16.mxu0 %v739
        %771 = vmatpush1.bf16.msra.mxu0 %v738
        %772 = vmatprep.subr.bf16.mxu0 %v741
        %773 = vmatpush1.bf16.msra.mxu0 %v740
        %774 = vmatprep.subr.bf16.mxu0 0
        %775 = vmatpush1.bf16.msra.mxu0 0
        %776 = vmatprep.subr.bf16.mxu0 0
        %777 = vmatpush1.bf16.msra.mxu0 0
        %778 = vmatprep.subr.bf16.mxu0 0
        %779 = vmatpush1.bf16.msra.mxu0 0
        %780 = vmatprep.subr.bf16.mxu0 0
        %781 = vmatpush1.bf16.msra.mxu0 0
        %782 = vmatprep.subr.bf16.mxu0 0
        %783 = vmatpush1.bf16.msra.mxu0 0
        %784 = vmatprep.subr.bf16.mxu0 0
        %785 = vmatpush1.bf16.msra.mxu0 0
        %786 = vmatprep.subr.bf16.mxu0 0
        %787 = vmatpush1.bf16.msra.mxu0 0
        %788 = vmatprep.subr.bf16.mxu0 0
        %789 = vmatpush1.bf16.msra.mxu0 0
        %790 = vmatprep.mubr.bf16.mxu0 0
        %791 = vmatmul.mubr.bf16.gmra.mrb[0].mxu0 %v676
        %v792 = vpop.f32.mrb[0].mxu0
        %v793 = vadd.f32 0.0, %v792
        %v794 = vpop.f32.mrb[0].mxu0
        %v795 = vadd.f32 0.0, %v794
        %v796 = vpop.f32.mrb[0].mxu0
        %v797 = vpop.f32.mrb[0].mxu0
        %798 = vdwg.mxu0
        %v799 = vpack.i.b16 %v413, %v413
        %v800 = vlaneseq
        %v801 = vshrl.u32 %v800, 7
        %v802 = vsub.s32 0, %v801
        %v803 = vrot.slane %v799, %v802
        %v821 = vunpack.c.l.b16 %v303
        %v822 = vunpack.c.h.b16 %v303
        %v823 = vunpack.c.l.b16 %v304
        %v824 = vunpack.c.h.b16 %v304
        %v825 = vunpack.c.l.b16 %v305
        %v826 = vunpack.c.h.b16 %v305
        %v827 = vunpack.c.l.b16 %v306
        %v828 = vunpack.c.h.b16 %v306
        %v829 = vunpack.c.l.b16 %v307
        %v830 = vunpack.c.h.b16 %v307
        %v831 = vunpack.c.l.b16 %v308
        %v832 = vunpack.c.h.b16 %v308
        %v833 = vunpack.c.l.b16 %v309
        %v834 = vunpack.c.h.b16 %v309
        %v835 = vunpack.c.l.b16 %v310
        %v836 = vunpack.c.h.b16 %v310
        %v837 = vunpack.c.l.b16 %v311
        %v838 = vunpack.c.h.b16 %v311
        %v839 = vunpack.c.l.b16 %v312
        %v840 = vunpack.c.h.b16 %v312
        %v841 = vunpack.c.l.b16 %v313
        %v842 = vunpack.c.h.b16 %v313
        %v843 = vunpack.c.l.b16 %v314
        %v844 = vunpack.c.h.b16 %v314
        %v845 = vunpack.c.l.b16 %v315
        %v846 = vunpack.c.h.b16 %v315
        %v847 = vunpack.c.l.b16 %v316
        %v848 = vunpack.c.h.b16 %v316
        %v849 = vunpack.c.l.b16 %v317
        %v850 = vunpack.c.h.b16 %v317
        %v851 = vunpack.c.l.b16 %v318
        %v852 = vunpack.c.h.b16 %v318
        %v853 = vpack.c.b16 %v823, %v821
        %v854 = vpack.c.b16 %v824, %v822
        %v855 = vpack.c.b16 %v827, %v825
        %v856 = vpack.c.b16 %v828, %v826
        %v857 = vpack.c.b16 %v831, %v829
        %v858 = vpack.c.b16 %v832, %v830
        %v859 = vpack.c.b16 %v835, %v833
        %v860 = vpack.c.b16 %v836, %v834
        %v861 = vpack.c.b16 %v839, %v837
        %v862 = vpack.c.b16 %v840, %v838
        %v863 = vpack.c.b16 %v843, %v841
        %v864 = vpack.c.b16 %v844, %v842
        %v865 = vpack.c.b16 %v847, %v845
        %v866 = vpack.c.b16 %v848, %v846
        %v867 = vpack.c.b16 %v851, %v849
        %v868 = vpack.c.b16 %v852, %v850
        %885 = vmatprep.subr.bf16.mxu0 %v854
        %886 = vmatpush1.bf16.msra.mxu0 %v853
        %887 = vmatprep.subr.bf16.mxu0 %v856
        %888 = vmatpush1.bf16.msra.mxu0 %v855
        %889 = vmatprep.subr.bf16.mxu0 %v858
        %890 = vmatpush1.bf16.msra.mxu0 %v857
        %891 = vmatprep.subr.bf16.mxu0 %v860
        %892 = vmatpush1.bf16.msra.mxu0 %v859
        %893 = vmatprep.subr.bf16.mxu0 %v862
        %894 = vmatpush1.bf16.msra.mxu0 %v861
        %895 = vmatprep.subr.bf16.mxu0 %v864
        %896 = vmatpush1.bf16.msra.mxu0 %v863
        %897 = vmatprep.subr.bf16.mxu0 %v866
        %898 = vmatpush1.bf16.msra.mxu0 %v865
        %899 = vmatprep.subr.bf16.mxu0 %v868
        %900 = vmatpush1.bf16.msra.mxu0 %v867
        %901 = vmatprep.subr.bf16.mxu0 0
        %902 = vmatpush1.bf16.msra.mxu0 0
        %903 = vmatprep.subr.bf16.mxu0 0
        %904 = vmatpush1.bf16.msra.mxu0 0
        %905 = vmatprep.subr.bf16.mxu0 0
        %906 = vmatpush1.bf16.msra.mxu0 0
        %907 = vmatprep.subr.bf16.mxu0 0
        %908 = vmatpush1.bf16.msra.mxu0 0
        %909 = vmatprep.subr.bf16.mxu0 0
        %910 = vmatpush1.bf16.msra.mxu0 0
        %911 = vmatprep.subr.bf16.mxu0 0
        %912 = vmatpush1.bf16.msra.mxu0 0
        %913 = vmatprep.subr.bf16.mxu0 0
        %914 = vmatpush1.bf16.msra.mxu0 0
        %915 = vmatprep.subr.bf16.mxu0 0
        %916 = vmatpush1.bf16.msra.mxu0 0
        %917 = vmatprep.mubr.bf16.mxu0 0
        %918 = vmatmul.mubr.bf16.gmra.mrb[0].mxu0 %v803
        %v919 = vpop.f32.mrb[0].mxu0
        %v920 = vadd.f32 0.0, %v919
        %v921 = vpop.f32.mrb[0].mxu0
        %v922 = vadd.f32 0.0, %v921
        %v923 = vpop.f32.mrb[0].mxu0
        %v924 = vpop.f32.mrb[0].mxu0
        %925 = vdwg.mxu0
        %v926 = vpack.i.b16 %v414, %v414
        %v927 = vlaneseq
        %v928 = vshrl.u32 %v927, 7
        %v929 = vsub.s32 0, %v928
        %v930 = vrot.slane %v926, %v929
        %v948 = vunpack.c.l.b16 %v319
        %v949 = vunpack.c.h.b16 %v319
        %v950 = vunpack.c.l.b16 %v320
        %v951 = vunpack.c.h.b16 %v320
        %v952 = vunpack.c.l.b16 %v321
        %v953 = vunpack.c.h.b16 %v321
        %v954 = vunpack.c.l.b16 %v322
        %v955 = vunpack.c.h.b16 %v322
        %v956 = vunpack.c.l.b16 %v323
        %v957 = vunpack.c.h.b16 %v323
        %v958 = vunpack.c.l.b16 %v324
        %v959 = vunpack.c.h.b16 %v324
        %v960 = vunpack.c.l.b16 %v325
        %v961 = vunpack.c.h.b16 %v325
        %v962 = vunpack.c.l.b16 %v326
        %v963 = vunpack.c.h.b16 %v326
        %v964 = vunpack.c.l.b16 %v327
        %v965 = vunpack.c.h.b16 %v327
        %v966 = vunpack.c.l.b16 %v328
        %v967 = vunpack.c.h.b16 %v328
        %v968 = vunpack.c.l.b16 %v329
        %v969 = vunpack.c.h.b16 %v329
        %v970 = vunpack.c.l.b16 %v330
        %v971 = vunpack.c.h.b16 %v330
        %v972 = vunpack.c.l.b16 %v331
        %v973 = vunpack.c.h.b16 %v331
        %v974 = vunpack.c.l.b16 %v332
        %v975 = vunpack.c.h.b16 %v332
        %v976 = vunpack.c.l.b16 %v333
        %v977 = vunpack.c.h.b16 %v333
        %v978 = vunpack.c.l.b16 %v334
        %v979 = vunpack.c.h.b16 %v334
        %v980 = vpack.c.b16 %v950, %v948
        %v981 = vpack.c.b16 %v951, %v949
        %v982 = vpack.c.b16 %v954, %v952
        %v983 = vpack.c.b16 %v955, %v953
        %v984 = vpack.c.b16 %v958, %v956
        %v985 = vpack.c.b16 %v959, %v957
        %v986 = vpack.c.b16 %v962, %v960
        %v987 = vpack.c.b16 %v963, %v961
        %v988 = vpack.c.b16 %v966, %v964
        %v989 = vpack.c.b16 %v967, %v965
        %v990 = vpack.c.b16 %v970, %v968
        %v991 = vpack.c.b16 %v971, %v969
        %v992 = vpack.c.b16 %v974, %v972
        %v993 = vpack.c.b16 %v975, %v973
        %v994 = vpack.c.b16 %v978, %v976
        %v995 = vpack.c.b16 %v979, %v977
        %1012 = vmatprep.subr.bf16.mxu0 %v981
        %1013 = vmatpush1.bf16.msra.mxu0 %v980
        %1014 = vmatprep.subr.bf16.mxu0 %v983
        %1015 = vmatpush1.bf16.msra.mxu0 %v982
        %1016 = vmatprep.subr.bf16.mxu0 %v985
        %1017 = vmatpush1.bf16.msra.mxu0 %v984
        %1018 = vmatprep.subr.bf16.mxu0 %v987
        %1019 = vmatpush1.bf16.msra.mxu0 %v986
        %1020 = vmatprep.subr.bf16.mxu0 %v989
        %1021 = vmatpush1.bf16.msra.mxu0 %v988
        %1022 = vmatprep.subr.bf16.mxu0 %v991
        %1023 = vmatpush1.bf16.msra.mxu0 %v990
        %1024 = vmatprep.subr.bf16.mxu0 %v993
        %1025 = vmatpush1.bf16.msra.mxu0 %v992
        %1026 = vmatprep.subr.bf16.mxu0 %v995
        %1027 = vmatpush1.bf16.msra.mxu0 %v994
        %1028 = vmatprep.subr.bf16.mxu0 0
        %1029 = vmatpush1.bf16.msra.mxu0 0
        %1030 = vmatprep.subr.bf16.mxu0 0
        %1031 = vmatpush1.bf16.msra.mxu0 0
        %1032 = vmatprep.subr.bf16.mxu0 0
        %1033 = vmatpush1.bf16.msra.mxu0 0
        %1034 = vmatprep.subr.bf16.mxu0 0
        %1035 = vmatpush1.bf16.msra.mxu0 0
        %1036 = vmatprep.subr.bf16.mxu0 0
        %1037 = vmatpush1.bf16.msra.mxu0 0
        %1038 = vmatprep.subr.bf16.mxu0 0
        %1039 = vmatpush1.bf16.msra.mxu0 0
        %1040 = vmatprep.subr.bf16.mxu0 0
        %1041 = vmatpush1.bf16.msra.mxu0 0
        %1042 = vmatprep.subr.bf16.mxu0 0
        %1043 = vmatpush1.bf16.msra.mxu0 0
        %1044 = vmatprep.mubr.bf16.mxu0 0
        %1045 = vmatmul.mubr.bf16.gmra.mrb[0].mxu0 %v930
        %v1046 = vpop.f32.mrb[0].mxu0
        %v1047 = vadd.f32 0.0, %v1046
        %v1048 = vpop.f32.mrb[0].mxu0
        %v1049 = vadd.f32 0.0, %v1048
        %v1050 = vpop.f32.mrb[0].mxu0
        %v1051 = vpop.f32.mrb[0].mxu0
        %1052 = vdwg.mxu0
        %v1053 = vpack.i.b16 %v415, %v415
        %v1054 = vlaneseq
        %v1055 = vshrl.u32 %v1054, 7
        %v1056 = vsub.s32 0, %v1055
        %v1057 = vrot.slane %v1053, %v1056
        %v1075 = vunpack.c.l.b16 %v335
        %v1076 = vunpack.c.h.b16 %v335
        %v1077 = vunpack.c.l.b16 %v336
        %v1078 = vunpack.c.h.b16 %v336
        %v1079 = vunpack.c.l.b16 %v337
        %v1080 = vunpack.c.h.b16 %v337
        %v1081 = vunpack.c.l.b16 %v338
        %v1082 = vunpack.c.h.b16 %v338
        %v1083 = vunpack.c.l.b16 %v339
        %v1084 = vunpack.c.h.b16 %v339
        %v1085 = vunpack.c.l.b16 %v340
        %v1086 = vunpack.c.h.b16 %v340
        %v1087 = vunpack.c.l.b16 %v341
        %v1088 = vunpack.c.h.b16 %v341
        %v1089 = vunpack.c.l.b16 %v342
        %v1090 = vunpack.c.h.b16 %v342
        %v1091 = vunpack.c.l.b16 %v343
        %v1092 = vunpack.c.h.b16 %v343
        %v1093 = vunpack.c.l.b16 %v344
        %v1094 = vunpack.c.h.b16 %v344
        %v1095 = vunpack.c.l.b16 %v345
        %v1096 = vunpack.c.h.b16 %v345
        %v1097 = vunpack.c.l.b16 %v346
        %v1098 = vunpack.c.h.b16 %v346
        %v1099 = vunpack.c.l.b16 %v347
        %v1100 = vunpack.c.h.b16 %v347
        %v1101 = vunpack.c.l.b16 %v348
        %v1102 = vunpack.c.h.b16 %v348
        %v1103 = vunpack.c.l.b16 %v349
        %v1104 = vunpack.c.h.b16 %v349
        %v1105 = vunpack.c.l.b16 %v350
        %v1106 = vunpack.c.h.b16 %v350
        %v1107 = vpack.c.b16 %v1077, %v1075
        %v1108 = vpack.c.b16 %v1078, %v1076
        %v1109 = vpack.c.b16 %v1081, %v1079
        %v1110 = vpack.c.b16 %v1082, %v1080
        %v1111 = vpack.c.b16 %v1085, %v1083
        %v1112 = vpack.c.b16 %v1086, %v1084
        %v1113 = vpack.c.b16 %v1089, %v1087
        %v1114 = vpack.c.b16 %v1090, %v1088
        %v1115 = vpack.c.b16 %v1093, %v1091
        %v1116 = vpack.c.b16 %v1094, %v1092
        %v1117 = vpack.c.b16 %v1097, %v1095
        %v1118 = vpack.c.b16 %v1098, %v1096
        %v1119 = vpack.c.b16 %v1101, %v1099
        %v1120 = vpack.c.b16 %v1102, %v1100
        %v1121 = vpack.c.b16 %v1105, %v1103
        %v1122 = vpack.c.b16 %v1106, %v1104
        %1139 = vmatprep.subr.bf16.mxu0 %v1108
        %1140 = vmatpush1.bf16.msra.mxu0 %v1107
        %1141 = vmatprep.subr.bf16.mxu0 %v1110
        %1142 = vmatpush1.bf16.msra.mxu0 %v1109
        %1143 = vmatprep.subr.bf16.mxu0 %v1112
        %1144 = vmatpush1.bf16.msra.mxu0 %v1111
        %1145 = vmatprep.subr.bf16.mxu0 %v1114
        %1146 = vmatpush1.bf16.msra.mxu0 %v1113
        %1147 = vmatprep.subr.bf16.mxu0 %v1116
        %1148 = vmatpush1.bf16.msra.mxu0 %v1115
        %1149 = vmatprep.subr.bf16.mxu0 %v1118
        %1150 = vmatpush1.bf16.msra.mxu0 %v1117
        %1151 = vmatprep.subr.bf16.mxu0 %v1120
        %1152 = vmatpush1.bf16.msra.mxu0 %v1119
        %1153 = vmatprep.subr.bf16.mxu0 %v1122
        %1154 = vmatpush1.bf16.msra.mxu0 %v1121
        %1155 = vmatprep.subr.bf16.mxu0 0
        %1156 = vmatpush1.bf16.msra.mxu0 0
        %1157 = vmatprep.subr.bf16.mxu0 0
        %1158 = vmatpush1.bf16.msra.mxu0 0
        %1159 = vmatprep.subr.bf16.mxu0 0
        %1160 = vmatpush1.bf16.msra.mxu0 0
        %1161 = vmatprep.subr.bf16.mxu0 0
        %1162 = vmatpush1.bf16.msra.mxu0 0
        %1163 = vmatprep.subr.bf16.mxu0 0
        %1164 = vmatpush1.bf16.msra.mxu0 0
        %1165 = vmatprep.subr.bf16.mxu0 0
        %1166 = vmatpush1.bf16.msra.mxu0 0
        %1167 = vmatprep.subr.bf16.mxu0 0
        %1168 = vmatpush1.bf16.msra.mxu0 0
        %1169 = vmatprep.subr.bf16.mxu0 0
        %1170 = vmatpush1.bf16.msra.mxu0 0
        %1171 = vmatprep.mubr.bf16.mxu0 0
        %1172 = vmatmul.mubr.bf16.gmra.mrb[0].mxu0 %v1057
        %v1173 = vpop.f32.mrb[0].mxu0
        %v1174 = vadd.f32 0.0, %v1173
        %v1175 = vpop.f32.mrb[0].mxu0
        %v1176 = vadd.f32 0.0, %v1175
        %v1177 = vpop.f32.mrb[0].mxu0
        %v1178 = vpop.f32.mrb[0].mxu0
        %1179 = vdwg.mxu0
        %v1180 = vpack.i.b16 %v416, %v416
        %v1181 = vlaneseq
        %v1182 = vshrl.u32 %v1181, 7
        %v1183 = vsub.s32 0, %v1182
        %v1184 = vrot.slane %v1180, %v1183
        %v1202 = vunpack.c.l.b16 %v351
        %v1203 = vunpack.c.h.b16 %v351
        %v1204 = vunpack.c.l.b16 %v352
        %v1205 = vunpack.c.h.b16 %v352
        %v1206 = vunpack.c.l.b16 %v353
        %v1207 = vunpack.c.h.b16 %v353
        %v1208 = vunpack.c.l.b16 %v354
        %v1209 = vunpack.c.h.b16 %v354
        %v1210 = vunpack.c.l.b16 %v355
        %v1211 = vunpack.c.h.b16 %v355
        %v1212 = vunpack.c.l.b16 %v356
        %v1213 = vunpack.c.h.b16 %v356
        %v1214 = vunpack.c.l.b16 %v357
        %v1215 = vunpack.c.h.b16 %v357
        %v1216 = vunpack.c.l.b16 %v358
        %v1217 = vunpack.c.h.b16 %v358
        %v1218 = vunpack.c.l.b16 %v359
        %v1219 = vunpack.c.h.b16 %v359
        %v1220 = vunpack.c.l.b16 %v360
        %v1221 = vunpack.c.h.b16 %v360
        %v1222 = vunpack.c.l.b16 %v361
        %v1223 = vunpack.c.h.b16 %v361
        %v1224 = vunpack.c.l.b16 %v362
        %v1225 = vunpack.c.h.b16 %v362
        %v1226 = vunpack.c.l.b16 %v363
        %v1227 = vunpack.c.h.b16 %v363
        %v1228 = vunpack.c.l.b16 %v364
        %v1229 = vunpack.c.h.b16 %v364
        %v1230 = vunpack.c.l.b16 %v365
        %v1231 = vunpack.c.h.b16 %v365
        %v1232 = vunpack.c.l.b16 %v366
        %v1233 = vunpack.c.h.b16 %v366
        %v1234 = vpack.c.b16 %v1204, %v1202
        %v1235 = vpack.c.b16 %v1205, %v1203
        %v1236 = vpack.c.b16 %v1208, %v1206
        %v1237 = vpack.c.b16 %v1209, %v1207
        %v1238 = vpack.c.b16 %v1212, %v1210
        %v1239 = vpack.c.b16 %v1213, %v1211
        %v1240 = vpack.c.b16 %v1216, %v1214
        %v1241 = vpack.c.b16 %v1217, %v1215
        %v1242 = vpack.c.b16 %v1220, %v1218
        %v1243 = vpack.c.b16 %v1221, %v1219
        %v1244 = vpack.c.b16 %v1224, %v1222
        %v1245 = vpack.c.b16 %v1225, %v1223
        %v1246 = vpack.c.b16 %v1228, %v1226
        %v1247 = vpack.c.b16 %v1229, %v1227
        %v1248 = vpack.c.b16 %v1232, %v1230
        %v1249 = vpack.c.b16 %v1233, %v1231
        %1266 = vmatprep.subr.bf16.mxu0 %v1235
        %1267 = vmatpush1.bf16.msra.mxu0 %v1234
        %1268 = vmatprep.subr.bf16.mxu0 %v1237
        %1269 = vmatpush1.bf16.msra.mxu0 %v1236
        %1270 = vmatprep.subr.bf16.mxu0 %v1239
        %1271 = vmatpush1.bf16.msra.mxu0 %v1238
        %1272 = vmatprep.subr.bf16.mxu0 %v1241
        %1273 = vmatpush1.bf16.msra.mxu0 %v1240
        %1274 = vmatprep.subr.bf16.mxu0 %v1243
        %1275 = vmatpush1.bf16.msra.mxu0 %v1242
        %1276 = vmatprep.subr.bf16.mxu0 %v1245
        %1277 = vmatpush1.bf16.msra.mxu0 %v1244
        %1278 = vmatprep.subr.bf16.mxu0 %v1247
        %1279 = vmatpush1.bf16.msra.mxu0 %v1246
        %1280 = vmatprep.subr.bf16.mxu0 %v1249
        %1281 = vmatpush1.bf16.msra.mxu0 %v1248
        %1282 = vmatprep.subr.bf16.mxu0 0
        %1283 = vmatpush1.bf16.msra.mxu0 0
        %1284 = vmatprep.subr.bf16.mxu0 0
        %1285 = vmatpush1.bf16.msra.mxu0 0
        %1286 = vmatprep.subr.bf16.mxu0 0
        %1287 = vmatpush1.bf16.msra.mxu0 0
        %1288 = vmatprep.subr.bf16.mxu0 0
        %1289 = vmatpush1.bf16.msra.mxu0 0
        %1290 = vmatprep.subr.bf16.mxu0 0
        %1291 = vmatpush1.bf16.msra.mxu0 0
        %1292 = vmatprep.subr.bf16.mxu0 0
        %1293 = vmatpush1.bf16.msra.mxu0 0
        %1294 = vmatprep.subr.bf16.mxu0 0
        %1295 = vmatpush1.bf16.msra.mxu0 0
        %1296 = vmatprep.subr.bf16.mxu0 0
        %1297 = vmatpush1.bf16.msra.mxu0 0
        %1298 = vmatprep.mubr.bf16.mxu0 0
        %1299 = vmatmul.mubr.bf16.gmra.mrb[0].mxu0 %v1184
        %v1300 = vpop.f32.mrb[0].mxu0
        %v1301 = vadd.f32 0.0, %v1300
        %v1302 = vpop.f32.mrb[0].mxu0
        %v1303 = vadd.f32 0.0, %v1302
        %v1304 = vpop.f32.mrb[0].mxu0
        %v1305 = vpop.f32.mrb[0].mxu0
        %1306 = vdwg.mxu0
        %v1307 = vpack.i.b16 %v417, %v417
        %v1308 = vlaneseq
        %v1309 = vshrl.u32 %v1308, 7
        %v1310 = vsub.s32 0, %v1309
        %v1311 = vrot.slane %v1307, %v1310
        %v1329 = vunpack.c.l.b16 %v367
        %v1330 = vunpack.c.h.b16 %v367
        %v1331 = vunpack.c.l.b16 %v368
        %v1332 = vunpack.c.h.b16 %v368
        %v1333 = vunpack.c.l.b16 %v369
        %v1334 = vunpack.c.h.b16 %v369
        %v1335 = vunpack.c.l.b16 %v370
        %v1336 = vunpack.c.h.b16 %v370
        %v1337 = vunpack.c.l.b16 %v371
        %v1338 = vunpack.c.h.b16 %v371
        %v1339 = vunpack.c.l.b16 %v372
        %v1340 = vunpack.c.h.b16 %v372
        %v1341 = vunpack.c.l.b16 %v373
        %v1342 = vunpack.c.h.b16 %v373
        %v1343 = vunpack.c.l.b16 %v374
        %v1344 = vunpack.c.h.b16 %v374
        %v1345 = vunpack.c.l.b16 %v375
        %v1346 = vunpack.c.h.b16 %v375
        %v1347 = vunpack.c.l.b16 %v376
        %v1348 = vunpack.c.h.b16 %v376
        %v1349 = vunpack.c.l.b16 %v377
        %v1350 = vunpack.c.h.b16 %v377
        %v1351 = vunpack.c.l.b16 %v378
        %v1352 = vunpack.c.h.b16 %v378
        %v1353 = vunpack.c.l.b16 %v379
        %v1354 = vunpack.c.h.b16 %v379
        %v1355 = vunpack.c.l.b16 %v380
        %v1356 = vunpack.c.h.b16 %v380
        %v1357 = vunpack.c.l.b16 %v381
        %v1358 = vunpack.c.h.b16 %v381
        %v1359 = vunpack.c.l.b16 %v382
        %v1360 = vunpack.c.h.b16 %v382
        %v1361 = vpack.c.b16 %v1331, %v1329
        %v1362 = vpack.c.b16 %v1332, %v1330
        %v1363 = vpack.c.b16 %v1335, %v1333
        %v1364 = vpack.c.b16 %v1336, %v1334
        %v1365 = vpack.c.b16 %v1339, %v1337
        %v1366 = vpack.c.b16 %v1340, %v1338
        %v1367 = vpack.c.b16 %v1343, %v1341
        %v1368 = vpack.c.b16 %v1344, %v1342
        %v1369 = vpack.c.b16 %v1347, %v1345
        %v1370 = vpack.c.b16 %v1348, %v1346
        %v1371 = vpack.c.b16 %v1351, %v1349
        %v1372 = vpack.c.b16 %v1352, %v1350
        %v1373 = vpack.c.b16 %v1355, %v1353
        %v1374 = vpack.c.b16 %v1356, %v1354
        %v1375 = vpack.c.b16 %v1359, %v1357
        %v1376 = vpack.c.b16 %v1360, %v1358
        %1393 = vmatprep.subr.bf16.mxu0 %v1362
        %1394 = vmatpush1.bf16.msra.mxu0 %v1361
        %1395 = vmatprep.subr.bf16.mxu0 %v1364
        %1396 = vmatpush1.bf16.msra.mxu0 %v1363
        %1397 = vmatprep.subr.bf16.mxu0 %v1366
        %1398 = vmatpush1.bf16.msra.mxu0 %v1365
        %1399 = vmatprep.subr.bf16.mxu0 %v1368
        %1400 = vmatpush1.bf16.msra.mxu0 %v1367
        %1401 = vmatprep.subr.bf16.mxu0 %v1370
        %1402 = vmatpush1.bf16.msra.mxu0 %v1369
        %1403 = vmatprep.subr.bf16.mxu0 %v1372
        %1404 = vmatpush1.bf16.msra.mxu0 %v1371
        %1405 = vmatprep.subr.bf16.mxu0 %v1374
        %1406 = vmatpush1.bf16.msra.mxu0 %v1373
        %1407 = vmatprep.subr.bf16.mxu0 %v1376
        %1408 = vmatpush1.bf16.msra.mxu0 %v1375
        %1409 = vmatprep.subr.bf16.mxu0 0
        %1410 = vmatpush1.bf16.msra.mxu0 0
        %1411 = vmatprep.subr.bf16.mxu0 0
        %1412 = vmatpush1.bf16.msra.mxu0 0
        %1413 = vmatprep.subr.bf16.mxu0 0
        %1414 = vmatpush1.bf16.msra.mxu0 0
        %1415 = vmatprep.subr.bf16.mxu0 0
        %1416 = vmatpush1.bf16.msra.mxu0 0
        %1417 = vmatprep.subr.bf16.mxu0 0
        %1418 = vmatpush1.bf16.msra.mxu0 0
        %1419 = vmatprep.subr.bf16.mxu0 0
        %1420 = vmatpush1.bf16.msra.mxu0 0
        %1421 = vmatprep.subr.bf16.mxu0 0
        %1422 = vmatpush1.bf16.msra.mxu0 0
        %1423 = vmatprep.subr.bf16.mxu0 0
        %1424 = vmatpush1.bf16.msra.mxu0 0
        %1425 = vmatprep.mubr.bf16.mxu0 0
        %1426 = vmatmul.mubr.bf16.gmra.mrb[0].mxu0 %v1311
        %v1427 = vpop.f32.mrb[0].mxu0
        %v1428 = vadd.f32 0.0, %v1427
        %v1429 = vpop.f32.mrb[0].mxu0
        %v1430 = vadd.f32 0.0, %v1429
        %v1431 = vpop.f32.mrb[0].mxu0
        %v1432 = vpop.f32.mrb[0].mxu0
        %1433 = vdwg.mxu0
        %v1434 = vld [vmem:[%s245] sm:$0xff]
        %v1435 = vld [vmem:[%s245 + $0x8] sm:$0xff]
        %v1452 = vrot.slane %v666, 7
        %vm1453 = vcmask 1041409
        %v1454 = vsel %vm1453, %v1452, %v539
        %v1455 = vrot.slane %v793, 6
        %vm1456 = vcmask 1042434
        %v1457 = vsel %vm1456, %v1455, %v1454
        %v1458 = vrot.slane %v920, 5
        %vm1459 = vcmask 1043459
        %v1460 = vsel %vm1459, %v1458, %v1457
        %v1461 = vrot.slane %v1047, 4
        %vm1462 = vcmask 1044484
        %v1463 = vsel %vm1462, %v1461, %v1460
        %v1464 = vrot.slane %v1174, 3
        %vm1465 = vcmask 1045509
        %v1466 = vsel %vm1465, %v1464, %v1463
        %v1467 = vrot.slane %v1301, 2
        %vm1468 = vcmask 1046534
        %v1469 = vsel %vm1468, %v1467, %v1466
        %v1470 = vrot.slane %v1428, 1
        %vm1471 = vcmask 1047559
        %v1472 = vsel %vm1471, %v1470, %v1469
        %v1473 = vrot.slane %v668, 7
        %v1474 = vsel %vm1453, %v1473, %v541
        %v1475 = vrot.slane %v795, 6
        %v1476 = vsel %vm1456, %v1475, %v1474
        %v1477 = vrot.slane %v922, 5
        %v1478 = vsel %vm1459, %v1477, %v1476
        %v1479 = vrot.slane %v1049, 4
        %v1480 = vsel %vm1462, %v1479, %v1478
        %v1481 = vrot.slane %v1176, 3
        %v1482 = vsel %vm1465, %v1481, %v1480
        %v1483 = vrot.slane %v1303, 2
        %v1484 = vsel %vm1468, %v1483, %v1482
        %v1485 = vrot.slane %v1430, 1
        %v1486 = vsel %vm1471, %v1485, %v1484
        %v1489 = vadd.f32 %v1434, %v1472
        %v1490 = vadd.f32 %v1435, %v1486
        %1491 = vst [vmem:[%s245] sm:$0xff] %v1489
        %1492 = vst [vmem:[%s245 + $0x8] sm:$0xff] %v1490
        %s1493 = sand.u32 %s98, 1
        %s1494 = scalar_lea.sflag [#allocation4], %s1493
        %s1495 = sand.u32 %s98, 1
        %s1496 = smul.addr %s1495, 16
        %s1497 = scalar_lea.vmem [#allocation7], %s1496
        // Predicated region
        $region41: #{tpu_custom_call.1} parent=27 // pred_check
          %p1498 = pneg %p108
        $region42: #{tpu_custom_call.1} parent=27 // pred_check_branch
          %1500 = sbr.rel (%p1498) target = $region44
        $region43: #{tpu_custom_call.1} parent=27 // pred_region
          %s1502 = ssub.s32 256, 256
          %1503 = vsyncadd %s1494, %s1502
          %s1504 = smul.addr %s26, 2
          %s1505 = smul.addr %s1504, 128
          %s1506 = scalar_lea.hbm %s2, %s1505
          %s1508 = sshll.u32 %s1497, 4
          %s1509 = int_to_ptr.vmem [resolvable:$true] %s1508
          %1511 = dma.vmem_to_hbm [thread:$0]  %s1509, 256, %s1506, %s1494
        $region44: #{tpu_custom_call.1} parent=27 // pred_fallthru
          _
      $region28: #{tpu_custom_call.1} parent=5 // pred_fallthru
        _
      %p1512 = scmp.le.s32.totalorder 2, %s17
      // Predicated region
      $region45: #{tpu_custom_call.1} parent=5 // pred_check
        %p1513 = pneg %p1512
      $region46: #{tpu_custom_call.1} parent=5 // pred_check_branch
        %1515 = sbr.rel (%p1513) target = $region48
      $region47: #{tpu_custom_call.1} parent=5 // pred_region
        %s1516 = ssub.s32 %s17, 2
        // Predicated region
        $region49: #{tpu_custom_call.1} parent=47 // pred_check
          %p1517 = pneg %p114
        $region50: #{tpu_custom_call.1} parent=47 // pred_check_branch
          %1519 = sbr.rel (%p1517) target = $region52
        $region51: #{tpu_custom_call.1} parent=47 // pred_region
          %s1520 = sand.u32 %s99, 1
          %s1521 = scalar_lea.sflag [#allocation4], %s1520
          %s1522 = sand.u32 %s99, 1
          %s1523 = smul.addr %s1522, 16
          %s1524 = scalar_lea.vmem [#allocation7], %s1523
          %1525 = dma.done %s1521, 256
        $region52: #{tpu_custom_call.1} parent=47 // pred_fallthru
          _
      $region48: #{tpu_custom_call.1} parent=5 // pred_fallthru
        _
    $region6: #{tpu_custom_call.1} parent=1 // loop_footer
      %s21 = sadd.s32 1, %s17
    $region7: #{tpu_custom_call.1} parent=1 // loop_footer_branch
      %16 = sbr.rel target = $region3
    $region8: #{tpu_custom_call.1} parent=1 // loop_exit
      _
    %1526 = vsyncpa [#allocation3], 1
    %s1527 = scalar_lea.sflag [#allocation3], 1
    %1528 = vsyncpa %s1527, 1
    %1529 = vsyncpa [#allocation6], 1
    %s1530 = scalar_lea.sflag [#allocation6], 1
    %1531 = vsyncpa %s1530, 1
    %1532 = vsyncpa [#allocation4], 1
    %s1533 = scalar_lea.sflag [#allocation4], 1
    %1534 = vsyncpa %s1533, 1

</llo_original>
